<compile_context>
chip_gen: v7x
topology: tpu7x:2x2x1
jax: 0.10.0
libtpu: 0.0.40
codegen_flags: <defaults>
</compile_context>

<pallas_src>
import jax
import jax.numpy as jnp
from jax.experimental import pallas as pl
from jax.experimental.pallas import tpu as pltpu


def _round_up(x, m):
    return ((x + m - 1) // m) * m


# ---------------------------------------------------------------------------
# Pallas kernel: fused reward head
#   out[t] = sum_k( relu(x[t] @ W1 + b1)[k] * w2[k] + b2/128 )  ==  ... + b2
# ---------------------------------------------------------------------------
def _reward_head_kernel(x_ref, w1_ref, bw_ref, o_ref):
    # x_ref:  (TM, H)  f32 token tile (bf16 cast done here, not in the wrapper,
    #                  so the f32 hidden states cross HBM exactly once)
    # w1_ref: (H, 128) bf16, resident (constant index_map, single-buffered)
    # bw_ref: (3, 128) f32: row0 = b1, row1 = w2, row2 = b2/128 (folded bias)
    # o_ref:  (TM, 1)  f32
    x = x_ref[...].astype(jnp.bfloat16)
    h = jnp.dot(x, w1_ref[...], preferred_element_type=jnp.float32)
    h = jnp.maximum(h + bw_ref[0:1, :], 0.0)  # bias + ReLU in f32
    # 128 -> 1 projection as a VPU multiply + XLU lane reduction (MXU slot kept
    # free; throughput is HBM-bound anyway).  b2 is folded as +b2/128 per lane
    # before the 128-lane sum, so no extra (1,1) operand / SMEM scalar needed.
    r = jnp.sum(h * bw_ref[1:2, :] + bw_ref[2:3, :], axis=-1, keepdims=True)
    o_ref[...] = r.astype(o_ref.dtype)


def _pick_token_tile(M, H):
    # Size the tile by bytes/step (f32 x tile = tm*H*4 B), not token count:
    # a few MiB per step amortizes the ~0.35us pipeline overhead while keeping
    # double-buffered x well inside v7x's 64 MiB VMEM.  v5e/v6e (128 MiB) could
    # go larger, but these sizes already saturate HBM.
    if H <= 2048:
        tm = 1024
    elif H <= 4096:
        tm = 512
    elif H <= 8192:
        tm = 256
    else:
        tm = 128
    tm = min(tm, _round_up(M, 8))
    tm = max(8, _round_up(tm, 8))
    # Ensure >= 2 grid steps so the "parallel" axis can shard across both
    # TensorCores on v7x (one step == one idle core on a mem-bound kernel).
    while tm > 8 and pl.cdiv(M, tm) < 2:
        tm = max(8, _round_up(tm // 2, 8))
    return tm


def _vmem_limit_bytes(tm, H):
    # Accurate per-buffer accounting: constant-index operands (W1, biases) are
    # single-buffered, only the x stream and the output are double-buffered.
    x_bytes = 2 * tm * H * 4          # f32 x tile, double-buffered
    w1_bytes = H * 128 * 2            # bf16 W1, single buffer (Buffered(1))
    bw_bytes = 8 * 128 * 4            # (3,128) f32 padded to (8,128)
    out_bytes = 2 * tm * 128 * 4      # (tm,1) f32 block pads lanes to 128
    want = int(1.25 * (x_bytes + w1_bytes + bw_bytes + out_bytes)) + (2 << 20)
    cap = 48 << 20                    # generation-safe (< v7x's 64 MiB physical)
    try:
        cap = max(cap, pltpu.get_tpu_info().vmem_capacity_bytes - (12 << 20))
    except Exception:
        pass
    return int(max(32 << 20, min(want, cap)))


def reward_head_pallas(hidden_states, w1, b1, w2, b2):
    """Linear(H,128) -> ReLU -> Linear(128,1) per token, fused in one kernel.

    hidden_states: [B, S, H] float32
    returns:       [B, S, 1] float32
    """
    B, S, H = hidden_states.shape
    M = B * S
    tm = _pick_token_tile(M, H)
    num_tiles = pl.cdiv(M, tm)

    # Free view; no pad / no standalone cast over the dominant [M, H] tensor.
    x = hidden_states.reshape(M, H)

    w1_bf16 = w1.astype(jnp.bfloat16)  # H*128*2 B — negligible
    bw = jnp.concatenate(
        [
            b1.reshape(1, 128).astype(jnp.float32),
            w2.reshape(1, 128).astype(jnp.float32),
            jnp.broadcast_to(
                b2.reshape(1, 1).astype(jnp.float32) / 128.0, (1, 128)
            ),
        ],
        axis=0,
    )  # (3, 128): one small resident operand instead of three

    out = pl.pallas_call(
        _reward_head_kernel,
        out_shape=jax.ShapeDtypeStruct((M, 1), jnp.float32),
        grid_spec=pltpu.PrefetchScalarGridSpec(
            num_scalar_prefetch=0,
            grid=(num_tiles,),
            in_specs=[
                # x stream: default double-buffering; raise to
                # pipeline_mode=pl.Buffered(3) if profiling shows exposed DMA
                # (mem-bound kernel, very short per-tile compute).
                pl.BlockSpec((tm, H), lambda i: (i, 0)),
                # Constant-index operands: single-buffered, stay resident.
                pl.BlockSpec((H, 128), lambda i: (0, 0),
                             pipeline_mode=pl.Buffered(1)),
                pl.BlockSpec((3, 128), lambda i: (0, 0),
                             pipeline_mode=pl.Buffered(1)),
            ],
            out_specs=pl.BlockSpec((tm, 1), lambda i: (i, 0)),
        ),
        compiler_params=pltpu.CompilerParams(
            dimension_semantics=("parallel",),
            vmem_limit_bytes=_vmem_limit_bytes(tm, H),
        ),
    )(x, w1_bf16, bw)

    return out.reshape(B, S, 1)


# ---------------------------------------------------------------------------
# RewardNetwork forward (plain JAX glue around the Pallas reward head)
# ---------------------------------------------------------------------------
def reward_network_forward(params, input_ids, attention_mask=None):
    """Mirrors RewardNetwork.forward: base_model -> reward_head."""
    # Stand-in for base_model(input_ids, attention_mask).last_hidden_state.
    # The attention_mask only feeds the base model in the PyTorch module; the
    # reward head itself is strictly per-token.
    del attention_mask
    hidden_states = params["embed"][input_ids]  # [B, S, H] f32
    return reward_head_pallas(
        hidden_states, params["w1"], params["b1"], params["w2"], params["b2"]
    )  # [B, S, 1]


def get_sequence_reward(params, input_ids, attention_mask=None):
    """Mirrors RewardNetwork.get_sequence_reward: token_rewards.sum(dim=1).

    Note: like the PyTorch module, this sums over *all* S positions (the mask
    is not applied to the sum).  The [B, S, 1] tensor is tiny relative to the
    hidden-state traffic, so the XLA reduction is negligible.
    """
    token_rewards = reward_network_forward(params, input_ids, attention_mask)
    return token_rewards.sum(axis=1)  # [B, 1]


# ---------------------------------------------------------------------------
# Pure-JAX reference for correctness checking
# ---------------------------------------------------------------------------
def reward_head_ref(hidden_states, w1, b1, w2, b2):
    h = jnp.maximum(hidden_states @ w1 + b1, 0.0)
    return h @ w2 + b2


if __name__ == "__main__":
    # Small shapes consistent with the module's forward:
    # input_ids [B, S], hidden_size H, reward head H -> 128 -> 1.
    # (Production H >= 1024; with H=32 the lane dim is only 25% utilized and
    #  per-step overhead dominates — tile sizing is driven by bytes/step.)
    B, S, H, V = 2, 8, 32, 64

    key = jax.random.PRNGKey(0)
    k_emb, k_w1, k_b1, k_w2, k_b2, k_ids = jax.random.split(key, 6)

    params = {
        # synthetic "base model": deterministic embedding table (stand-in)
        "embed": jax.random.normal(k_emb, (V, H), jnp.float32) * 0.1,
        # reward_head = Linear(H,128) -> ReLU -> Linear(128,1)
        # (stored already transposed vs. PyTorch: y = x @ W + b)
        "w1": jax.random.normal(k_w1, (H, 128), jnp.float32) * 0.05,
        "b1": jax.random.normal(k_b1, (128,), jnp.float32) * 0.05,
        "w2": jax.random.normal(k_w2, (128, 1), jnp.float32) * 0.05,
        "b2": jax.random.normal(k_b2, (1,), jnp.float32) * 0.05,
    }

    input_ids = jax.random.randint(k_ids, (B, S), 0, V)
    attention_mask = jnp.ones((B, S), jnp.int32)

    rewards = jax.block_until_ready(
        reward_network_forward(params, input_ids, attention_mask)
    )
    seq_rewards = jax.block_until_ready(
        get_sequence_reward(params, input_ids, attention_mask)
    )

    # Check against pure-JAX f32 reference (kernel casts x/W1 to bf16 in-kernel
    # with f32 accumulation, so use a correspondingly loosened tolerance).
    hs = params["embed"][input_ids]
    ref = reward_head_ref(hs, params["w1"], params["b1"], params["w2"], params["b2"])
    assert rewards.shape == (B, S, 1)
    assert seq_rewards.shape == (B, 1)
    assert jnp.allclose(rewards, ref, atol=1e-2, rtol=1e-2), (
        float(jnp.max(jnp.abs(rewards - ref)))
    )
    assert jnp.allclose(seq_rewards, ref.sum(axis=1), atol=5e-2, rtol=1e-2), (
        float(jnp.max(jnp.abs(seq_rewards - ref.sum(axis=1))))
    )

    print("KERNEL_OK")
</pallas_src>

<mosaic_0001>
module attributes {stable_mosaic.version = 11 : i64} {
  func.func @_reward_head_kernel(%arg0: i32, %arg1: memref<8x32xf32, #tpu.memory_space<vmem>>, %arg2: memref<32x128xbf16, #tpu.memory_space<vmem>>, %arg3: memref<3x128xf32, #tpu.memory_space<vmem>>, %arg4: memref<8x1xf32, #tpu.memory_space<vmem>>) attributes {dimension_semantics = [#tpu.dimension_semantics<parallel>], iteration_bounds = array<i64: 2>, scalar_prefetch = 0 : i64, scratch_operands = 0 : i64, tpu.core_type = #tpu.core_type<tc>, window_params = [{transform_indices = @transform_0, window_bounds = array<i64: 8, 32>}, {pipeline_mode = #tpu.pipeline_mode<synchronous>, transform_indices = @transform_1, window_bounds = array<i64: 32, 128>}, {pipeline_mode = #tpu.pipeline_mode<synchronous>, transform_indices = @transform_2, window_bounds = array<i64: 3, 128>}, {transform_indices = @transform_3, window_bounds = array<i64: 8, 1>}]} {
    %c0 = arith.constant 0 : index
    %c0_0 = arith.constant 0 : index
    %0 = vector.load %arg1[%c0, %c0_0] : memref<8x32xf32, #tpu.memory_space<vmem>>, vector<8x32xf32>
    %1 = arith.truncf %0 : vector<8x32xf32> to vector<8x32xbf16>
    %c0_1 = arith.constant 0 : index
    %c0_2 = arith.constant 0 : index
    %2 = vector.load %arg2[%c0_1, %c0_2] : memref<32x128xbf16, #tpu.memory_space<vmem>>, vector<32x128xbf16>
    %cst = arith.constant dense<0.000000e+00> : vector<8x128xf32>
    %3 = tpu.matmul %1, %2, %cst {dimension_numbers = #tpu.dot_dimension_numbers<[1], [0], [0], [1], [0, 0, 1, 1], [], []>} : vector<8x32xbf16>, vector<32x128xbf16>, vector<8x128xf32> -> vector<8x128xf32>
    %c0_3 = arith.constant 0 : index
    %c0_4 = arith.constant 0 : index
    %4 = vector.load %arg3[%c0_3, %c0_4] : memref<3x128xf32, #tpu.memory_space<vmem>>, vector<1x128xf32>
    %5 = vector.broadcast %4 : vector<1x128xf32> to vector<8x128xf32>
    %6 = arith.addf %3, %5 : vector<8x128xf32>
    %cst_5 = arith.constant 0.000000e+00 : f32
    %7 = vector.broadcast %cst_5 : f32 to vector<8x128xf32>
    %8 = arith.maximumf %6, %7 : vector<8x128xf32>
    %c1 = arith.constant 1 : index
    %c0_6 = arith.constant 0 : index
    %9 = vector.load %arg3[%c1, %c0_6] : memref<3x128xf32, #tpu.memory_space<vmem>>, vector<1x128xf32>
    %10 = vector.broadcast %9 : vector<1x128xf32> to vector<8x128xf32>
    %11 = arith.mulf %8, %10 : vector<8x128xf32>
    %c2 = arith.constant 2 : index
    %c0_7 = arith.constant 0 : index
    %12 = vector.load %arg3[%c2, %c0_7] : memref<3x128xf32, #tpu.memory_space<vmem>>, vector<1x128xf32>
    %13 = vector.broadcast %12 : vector<1x128xf32> to vector<8x128xf32>
    %14 = arith.addf %11, %13 : vector<8x128xf32>
    %cst_8 = arith.constant dense<0.000000e+00> : vector<8xf32>
    %15 = vector.multi_reduction <add>, %14, %cst_8 [1] : vector<8x128xf32> to vector<8xf32>
    %16 = vector.shape_cast %15 : vector<8xf32> to vector<8x1xf32>
    %c0_9 = arith.constant 0 : index
    %c0_10 = arith.constant 0 : index
    %17 = vector.load %arg4[%c0_9, %c0_10] : memref<8x1xf32, #tpu.memory_space<vmem>>, vector<8x1xf32>
    tpu.vector_store %arg4[%c0_9, %c0_10], %16 {strides = array<i32>} : memref<8x1xf32, #tpu.memory_space<vmem>>, vector<8x1xf32>,
    return
  }
  func.func @transform_0(%arg0: i32) -> (i32, i32) {
    %c0_i32 = arith.constant 0 : i32
    %c0_i32_0 = arith.constant 0 : i32
    return %arg0, %c0_i32 : i32, i32
  }
  func.func @transform_1(%arg0: i32) -> (i32, i32) {
    %c0_i32 = arith.constant 0 : i32
    %c0_i32_0 = arith.constant 0 : i32
    %c0_i32_1 = arith.constant 0 : i32
    return %c0_i32, %c0_i32_0 : i32, i32
  }
  func.func @transform_2(%arg0: i32) -> (i32, i32) {
    %c0_i32 = arith.constant 0 : i32
    %c0_i32_0 = arith.constant 0 : i32
    %c0_i32_1 = arith.constant 0 : i32
    return %c0_i32, %c0_i32_0 : i32, i32
  }
  func.func @transform_3(%arg0: i32) -> (i32, i32) {
    %c0_i32 = arith.constant 0 : i32
    %c0_i32_0 = arith.constant 0 : i32
    return %arg0, %c0_i32 : i32, i32
  }
}

</mosaic_0001>

<llo_original>
// kernel: tpu_custom_call.1
$region0: #{tpu_custom_call.1}
  #allocation0 [shape = 'u32[]', space=smem, size = 0x4, offset = 0x4, fixed_abs, tag = 'smem constant byte address 0x4 - core index']
  #allocation1 [shape = 'u32[144,128]{1,0:T(1,128)}', space=vmem, size = 0x12000, scoped, tag = 'internal scratch']
  %s0 = inlined_call_operand.hbm [shape: f32[16,32], index: 0, kind: input, shape index: {}]
  %s1 = inlined_call_operand.hbm [shape: bf16[32,128], index: 1, kind: input, shape index: {}]
  %s2 = inlined_call_operand.vmem [shape: f32[3,128], index: 2, kind: input, shape index: {}]
  %s3 = inlined_call_operand.vmem [shape: f32[16,1], index: 3, kind: output, shape index: {}]
  %s4 = sld [smem:[#allocation0]]
  $region53: #{tpu_custom_call.1} parent=0
    _
  %s6 = ssub.s32 1, %s4
  %s7 = scalar_select 0, %s6, %s4
  $region1: #{tpu_custom_call.1} parent=0
    #allocation2 [shape = 'u8[8192]{0}', space=vmem, size = 0x2000, scoped, tag = 'input window, operand 0']
    #allocation3 [shape = 's32[2]{0}', space=sflag, size = 0x8, scoped, tag = 'scoped memory for tpu_custom_call.1']
    #allocation4 [shape = 'u8[8192]{0}', space=vmem, size = 0x2000, scoped, tag = 'input window, operand 1, single buffered']
    #allocation5 [shape = 's32[1]{0}', space=sflag, size = 0x4, scoped, tag = 'scoped memory for tpu_custom_call.1']
    %8 = vsyncpa [#allocation3], 0
    %s9 = scalar_lea.sflag [#allocation3], 1
    %10 = vsyncpa %s9, 0
    %11 = vsyncpa [#allocation5], 0
    loop: start=0, step=1, limit=4
    $region2: #{tpu_custom_call.1} parent=1 // loop_pre_header
      _
    $region3: #{tpu_custom_call.1} parent=1 // loop_header
      %s13 = sphi 0, %s17
      %p14 = scmp.ge.s32.totalorder %s13, 4
      %s23 = sphi 0, %s25
      %s26 = sphi 0, %s23
      %s27 = sphi 0, %s26
      %s43 = sphi 0, %s27
      %s47 = sphi 0, %s47
      %s49 = sphi 0, %s47
      %s50 = sphi 0, %s49
      %s64 = sphi 0, %s50
      %s68 = sphi 0, %s68
      %s70 = sphi 0, %s68
      %s71 = sphi 0, %s70
      %s85 = sphi 0, %s71
      %s91 = sphi 0, %s93
      %s94 = sphi 0, %s91
      %s95 = sphi 0, %s94
      %s111 = sphi 0, %s95
    $region4: #{tpu_custom_call.1} parent=1 // loop_header_branch
      %16 = sbr.rel (%p14) target = $region8
    $region5: #{tpu_custom_call.1} parent=1 // loop_body
      %s18 = ssub.s32 %s13, 1
      %s19 = ssub.s32 %s13, 2
      %s20 = sadd.s32 %s13, 1
      %s21 = ssub.s32 %s13, %s20
      %p22 = scmp.eq.s32.totalorder %s21, 0
      %s24 = sadd.s32 %s23, 1
      %s25 = scalar_select %p22, %s23, %s24
      %p28 = pneg %p22
      %p29 = scmp.eq.s32.totalorder %s13, 1
      %p30 = por %p28, %p29
      %p31 = scmp.ne.s32.totalorder %s23, %s26
      %p32 = scmp.eq.s32.totalorder %s13, 0
      %p33 = por %p31, %p32
      %p34 = scmp.ne.s32.totalorder %s23, %s26
      %p35 = scmp.eq.s32.totalorder %s18, 1
      %p36 = por %p34, %p35
      %p37 = scmp.ne.s32.totalorder %s26, %s27
      %p38 = scmp.eq.s32.totalorder %s18, 0
      %p39 = por %p37, %p38
      %p40 = scmp.ne.s32.totalorder %s26, %s27
      %p41 = scmp.eq.s32.totalorder %s19, 1
      %p42 = por %p40, %p41
      %p44 = scmp.ne.s32.totalorder %s27, %s43
      %p45 = scmp.eq.s32.totalorder %s19, 0
      %p46 = por %p44, %p45
      %s48 = sadd.s32 %s47, 1
      %p51 = scmp.eq.s32.totalorder %s13, 1
      %p52 = scmp.ne.s32.totalorder %s47, %s49
      %p53 = scmp.eq.s32.totalorder %s13, 0
      %p54 = por %p52, %p53
      %p55 = scmp.ne.s32.totalorder %s47, %s49
      %p56 = scmp.eq.s32.totalorder %s18, 1
      %p57 = por %p55, %p56
      %p58 = scmp.ne.s32.totalorder %s49, %s50
      %p59 = scmp.eq.s32.totalorder %s18, 0
      %p60 = por %p58, %p59
      %p61 = scmp.ne.s32.totalorder %s49, %s50
      %p62 = scmp.eq.s32.totalorder %s19, 1
      %p63 = por %p61, %p62
      %p65 = scmp.ne.s32.totalorder %s50, %s64
      %p66 = scmp.eq.s32.totalorder %s19, 0
      %p67 = por %p65, %p66
      %s69 = sadd.s32 %s68, 1
      %p72 = scmp.eq.s32.totalorder %s13, 1
      %p73 = scmp.ne.s32.totalorder %s68, %s70
      %p74 = scmp.eq.s32.totalorder %s13, 0
      %p75 = por %p73, %p74
      %p76 = scmp.ne.s32.totalorder %s68, %s70
      %p77 = scmp.eq.s32.totalorder %s18, 1
      %p78 = por %p76, %p77
      %p79 = scmp.ne.s32.totalorder %s70, %s71
      %p80 = scmp.eq.s32.totalorder %s18, 0
      %p81 = por %p79, %p80
      %p82 = scmp.ne.s32.totalorder %s70, %s71
      %p83 = scmp.eq.s32.totalorder %s19, 1
      %p84 = por %p82, %p83
      %p86 = scmp.ne.s32.totalorder %s71, %s85
      %p87 = scmp.eq.s32.totalorder %s19, 0
      %p88 = por %p86, %p87
      %s89 = ssub.s32 %s13, %s20
      %p90 = scmp.eq.s32.totalorder %s89, 0
      %s92 = sadd.s32 %s91, 1
      %s93 = scalar_select %p90, %s91, %s92
      %p96 = pneg %p90
      %p97 = scmp.eq.s32.totalorder %s13, 1
      %p98 = por %p96, %p97
      %p99 = scmp.ne.s32.totalorder %s91, %s94
      %p100 = scmp.eq.s32.totalorder %s13, 0
      %p101 = por %p99, %p100
      %p102 = scmp.ne.s32.totalorder %s91, %s94
      %p103 = scmp.eq.s32.totalorder %s18, 1
      %p104 = por %p102, %p103
      %p105 = scmp.ne.s32.totalorder %s94, %s95
      %p106 = scmp.eq.s32.totalorder %s18, 0
      %p107 = por %p105, %p106
      %p108 = scmp.ne.s32.totalorder %s94, %s95
      %p109 = scmp.eq.s32.totalorder %s19, 1
      %p110 = por %p108, %p109
      %p112 = scmp.ne.s32.totalorder %s95, %s111
      %p113 = scmp.eq.s32.totalorder %s19, 0
      %p114 = por %p112, %p113
      %p115 = scmp.le.s32.totalorder 1, %s13
      %p116 = scmp.lt.s32.totalorder %s13, 3
      %p117 = pnand %p115, %p116
      %p118 = pneg %p117
      // Predicated region
      $region9: #{tpu_custom_call.1} parent=5 // pred_check
        _
      $region10: #{tpu_custom_call.1} parent=5 // pred_check_branch
        %120 = sbr.rel (%p117) target = $region12
      $region11: #{tpu_custom_call.1} parent=5 // pred_region
        %s121 = ssub.s32 %s13, 1
        // Predicated region
        $region13: #{tpu_custom_call.1} parent=11 // pred_check
          %p122 = pneg %p60
        $region14: #{tpu_custom_call.1} parent=11 // pred_check_branch
          %124 = sbr.rel (%p122) target = $region16
        $region15: #{tpu_custom_call.1} parent=11 // pred_region
          %s126 = ssub.s32 256, 256
          %127 = vsyncadd [#allocation5], %s126
          %s128 = sshll.u32 [#allocation4], 4
          %s129 = int_to_ptr.vmem [resolvable:$true] %s128
          %134 = dma.hbm_to_vmem [thread:$0]  %s1, 256, %s129, [#allocation5], 64, 64, 4
        $region16: #{tpu_custom_call.1} parent=11 // pred_fallthru
          _
        // Predicated region
        $region17: #{tpu_custom_call.1} parent=11 // pred_check
          %p135 = pneg %p81
        $region18: #{tpu_custom_call.1} parent=11 // pred_check_branch
          %137 = sbr.rel (%p135) target = $region20
        $region19: #{tpu_custom_call.1} parent=11 // pred_region
          _
        $region20: #{tpu_custom_call.1} parent=11 // pred_fallthru
          _
      $region12: #{tpu_custom_call.1} parent=5 // pred_fallthru
        _
      %p138 = scmp.lt.s32.totalorder %s13, 2
      // Predicated region
      $region21: #{tpu_custom_call.1} parent=5 // pred_check
        %p139 = pneg %p138
      $region22: #{tpu_custom_call.1} parent=5 // pred_check_branch
        %141 = sbr.rel (%p139) target = $region24
      $region23: #{tpu_custom_call.1} parent=5 // pred_region
        // Predicated region
        $region25: #{tpu_custom_call.1} parent=23 // pred_check
          %p142 = pneg %p33
        $region26: #{tpu_custom_call.1} parent=23 // pred_check_branch
          %144 = sbr.rel (%p142) target = $region28
        $region27: #{tpu_custom_call.1} parent=23 // pred_region
          %s145 = sand.u32 %s23, 1
          %s146 = scalar_lea.sflag [#allocation3], %s145
          %s147 = sand.u32 %s23, 1
          %s148 = smul.addr %s147, 8
          %s149 = scalar_lea.vmem [#allocation2], %s148
          %s151 = ssub.s32 128, 128
          %152 = vsyncadd %s146, %s151
          %s153 = smul.addr %s13, 128
          %s154 = scalar_lea.hbm %s0, %s153
          %s156 = sshll.u32 %s149, 4
          %s157 = int_to_ptr.vmem [resolvable:$true] %s156
          %159 = dma.hbm_to_vmem [thread:$0]  %s154, 128, %s157, %s146
        $region28: #{tpu_custom_call.1} parent=23 // pred_fallthru
          _
      $region24: #{tpu_custom_call.1} parent=5 // pred_fallthru
        _
      %p160 = scmp.le.s32.totalorder 1, %s13
      %p161 = scmp.lt.s32.totalorder %s13, 3
      %p162 = pnand %p160, %p161
      %p163 = pneg %p162
      // Predicated region
      $region29: #{tpu_custom_call.1} parent=5 // pred_check
        _
      $region30: #{tpu_custom_call.1} parent=5 // pred_check_branch
        %165 = sbr.rel (%p162) target = $region32
      $region31: #{tpu_custom_call.1} parent=5 // pred_region
        %s166 = ssub.s32 %s13, 1
        %s167 = sand.u32 %s26, 1
        %s168 = scalar_lea.sflag [#allocation3], %s167
        %s169 = sand.u32 %s26, 1
        %s170 = smul.addr %s169, 8
        %s171 = scalar_lea.vmem [#allocation2], %s170
        // Predicated region
        $region33: #{tpu_custom_call.1} parent=31 // pred_check
          %p172 = pneg %p39
        $region34: #{tpu_custom_call.1} parent=31 // pred_check_branch
          %174 = sbr.rel (%p172) target = $region36
        $region35: #{tpu_custom_call.1} parent=31 // pred_region
          %175 = dma.done %s168, 128
        $region36: #{tpu_custom_call.1} parent=31 // pred_fallthru
          _
        // Predicated region
        $region37: #{tpu_custom_call.1} parent=31 // pred_check
          %p176 = pneg %p60
        $region38: #{tpu_custom_call.1} parent=31 // pred_check_branch
          %178 = sbr.rel (%p176) target = $region40
        $region39: #{tpu_custom_call.1} parent=31 // pred_region
          %179 = dma.done [#allocation5], 256
        $region40: #{tpu_custom_call.1} parent=31 // pred_fallthru
          _
        %s180 = sand.u32 %s26, 1
        %s181 = scalar_lea.sflag [#allocation3], %s180
        %s182 = sand.u32 %s26, 1
        %s183 = smul.addr %s182, 8
        %s184 = scalar_lea.vmem [#allocation2], %s183
        %p185 = pneg %p39
        %p186 = pneg %p36
        %p187 = pneg %p60
        %p188 = pneg %p57
        %p189 = pneg %p81
        %p190 = pneg %p78
        %p191 = pneg %p107
        %p192 = pneg %p104
        %p193 = scmp.lt.s32.totalorder %s18, 1
        %s194 = scalar_select %p193, %s18, 1
        %s195 = smul.addr %s194, 8
        %s196 = scalar_lea.vmem %s3, %s195
        %p197 = scmp.lt.s32.totalorder %s18, 1
        %s198 = scalar_select %p197, %s18, 1
        %s199 = smul.addr %s198, 8
        %s200 = scalar_lea.vmem %s3, %s199
        %v202 = vld [vmem:[%s171] sm:$0xff]
        %v203 = vpack.c.bf16 %v202, %v202
        %v204 = vld [vmem:[#allocation4] sm:$0xf]
        %v205 = vld [vmem:[#allocation4 + $0x4] sm:$0xf]
        %v206 = vld [vmem:[#allocation4 + $0x8] sm:$0xf]
        %v207 = vld [vmem:[#allocation4 + $0xc] sm:$0xf]
        %v208 = vld [vmem:[%s2] sm:$0x1]
        %v209 = vlaneseq
        %v210 = vshrl.u32 %v209, 7
        %v211 = vsub.s32 0, %v210
        %v212 = vrot.slane %v208, %v211
        %v217 = vunpack.c.l.b16 %v204
        %v218 = vunpack.c.l.b16 %v205
        %v219 = vunpack.c.l.b16 %v206
        %v220 = vunpack.c.l.b16 %v207
        %v221 = vpack.c.b16 %v218, %v217
        %v222 = vpack.c.b16 %v220, %v219
        %vm225 = vcmask 261120
        %v227 = vsel %vm225, %v203, 0
        %229 = vmatprep.subr.bf16.mxu0 0
        %230 = vmatpush1.bf16.msra.mxu0 %v221
        %231 = vmatprep.subr.bf16.mxu0 0
        %232 = vmatpush1.bf16.msra.mxu0 %v222
        %233 = vmatprep.subr.bf16.mxu0 0
        %234 = vmatpush1.bf16.msra.mxu0 0
        %235 = vmatprep.subr.bf16.mxu0 0
        %236 = vmatpush1.bf16.msra.mxu0 0
        %237 = vmatprep.subr.bf16.mxu0 0
        %238 = vmatpush1.bf16.msra.mxu0 0
        %239 = vmatprep.subr.bf16.mxu0 0
        %240 = vmatpush1.bf16.msra.mxu0 0
        %241 = vmatprep.subr.bf16.mxu0 0
        %242 = vmatpush1.bf16.msra.mxu0 0
        %243 = vmatprep.subr.bf16.mxu0 0
        %244 = vmatpush1.bf16.msra.mxu0 0
        %245 = vmatprep.subr.bf16.mxu0 0
        %246 = vmatpush1.bf16.msra.mxu0 0
        %247 = vmatprep.subr.bf16.mxu0 0
        %248 = vmatpush1.bf16.msra.mxu0 0
        %249 = vmatprep.subr.bf16.mxu0 0
        %250 = vmatpush1.bf16.msra.mxu0 0
        %251 = vmatprep.subr.bf16.mxu0 0
        %252 = vmatpush1.bf16.msra.mxu0 0
        %253 = vmatprep.subr.bf16.mxu0 0
        %254 = vmatpush1.bf16.msra.mxu0 0
        %255 = vmatprep.subr.bf16.mxu0 0
        %256 = vmatpush1.bf16.msra.mxu0 0
        %257 = vmatprep.subr.bf16.mxu0 0
        %258 = vmatpush1.bf16.msra.mxu0 0
        %259 = vmatprep.subr.bf16.mxu0 0
        %260 = vmatpush1.bf16.msra.mxu0 0
        %261 = vmatprep.mubr.bf16.mxu0 0
        %262 = vmatmul.mubr.bf16.gmra.mrb[0].mxu0 %v227
        %v263 = vpop.f32.mrb[0].mxu0
        %v264 = vadd.f32 %v212, %v263
        %v265 = vpop.f32.mrb[0].mxu0
        %v266 = vpop.f32.mrb[0].mxu0
        %v267 = vpop.f32.mrb[0].mxu0
        %268 = vdwg.mxu0
        %v269 = vmax.f32 %v264, 0.0
        %v270 = vld [vmem:[%s2 + $0x1] sm:$0x1]
        %v271 = vlaneseq
        %v272 = vshrl.u32 %v271, 7
        %v273 = vsub.s32 0, %v272
        %v274 = vrot.slane %v270, %v273
        %v275 = vmul.f32 %v269, %v274
        %v276 = vld [vmem:[%s2 + $0x2] sm:$0x1]
        %v277 = vlaneseq
        %v278 = vshrl.u32 %v277, 7
        %v279 = vsub.s32 0, %v278
        %v280 = vrot.slane %v276, %v279
        %v281 = vadd.f32 %v275, %v280
        %282 = vadd.xlane.f32.xlu0 %v281
        %v283 = vpop.xlane.xlu0 %282
        %vm284 = vcmask 7168
        %285 = vst.msk [vmem:[%s200] sm:$0xff] %vm284, %v283
        %p286 = scmp.lt.s32.totalorder %s18, 1
        %s287 = scalar_select %p286, %s18, 1
        %s288 = smul.addr %s287, 8
        %s289 = scalar_lea.vmem %s3, %s288
        // Predicated region
        $region41: #{tpu_custom_call.1} parent=31 // pred_check
          %p290 = pneg %p104
        $region42: #{tpu_custom_call.1} parent=31 // pred_check_branch
          %292 = sbr.rel (%p290) target = $region44
        $region43: #{tpu_custom_call.1} parent=31 // pred_region
          _
        $region44: #{tpu_custom_call.1} parent=31 // pred_fallthru
          _
      $region32: #{tpu_custom_call.1} parent=5 // pred_fallthru
        _
      %p293 = scmp.le.s32.totalorder 2, %s13
      // Predicated region
      $region45: #{tpu_custom_call.1} parent=5 // pred_check
        %p294 = pneg %p293
      $region46: #{tpu_custom_call.1} parent=5 // pred_check_branch
        %296 = sbr.rel (%p294) target = $region48
      $region47: #{tpu_custom_call.1} parent=5 // pred_region
        %s297 = ssub.s32 %s13, 2
        // Predicated region
        $region49: #{tpu_custom_call.1} parent=47 // pred_check
          %p298 = pneg %p110
        $region50: #{tpu_custom_call.1} parent=47 // pred_check_branch
          %300 = sbr.rel (%p298) target = $region52
        $region51: #{tpu_custom_call.1} parent=47 // pred_region
          %p301 = scmp.lt.s32.totalorder %s19, 1
          %s302 = scalar_select %p301, %s19, 1
          %s303 = smul.addr %s302, 8
          %s304 = scalar_lea.vmem %s3, %s303
        $region52: #{tpu_custom_call.1} parent=47 // pred_fallthru
          _
      $region48: #{tpu_custom_call.1} parent=5 // pred_fallthru
        _
    $region6: #{tpu_custom_call.1} parent=1 // loop_footer
      %s17 = sadd.s32 1, %s13
    $region7: #{tpu_custom_call.1} parent=1 // loop_footer_branch
      %12 = sbr.rel target = $region3
    $region8: #{tpu_custom_call.1} parent=1 // loop_exit
      _
    %305 = vsyncpa [#allocation3], 1
    %s306 = scalar_lea.sflag [#allocation3], 1
    %307 = vsyncpa %s306, 1
    %308 = vsyncpa [#allocation5], 1

</llo_original>
